<compile_context>
chip_gen: v6e
topology: v6e:2x2x1
jax: 0.10.0
libtpu: 0.0.40
codegen_flags: <defaults>
</compile_context>

<pallas_src>
import functools

import jax
import jax.numpy as jnp
from jax import lax
from jax.experimental import pallas as pl
from jax.experimental.pallas import tpu as pltpu

BN_EPS = 1e-5
LANE = 128            # pad channel-like dims to a full lane width
SUBLANE = 8           # pad batch to a full f32 sublane group
VMEM_LIMIT = 64 * 1024 * 1024   # <= v7x physical, > default scoped limits


def _round_up(n, m):
    return ((n + m - 1) // m) * m


def _pick_row_tile(n_rows, batch, target_rows=1024):
    """Largest row tile (multiple of `batch`, divides n_rows) near target_rows."""
    t_total = n_rows // batch
    t_chunk = max(1, min(t_total, max(1, target_rows // batch)))
    while t_total % t_chunk:
        t_chunk -= 1
    return t_chunk * batch


# ----------------------------------------------------------------------------
# Conv2d(kernel=(k,1), pad=(k//2,0)) + BatchNorm2d(eval) + ReLU, fused.
# Time-major flat layout: rows = t * B_pad + b. Output row-tiled, input resident.
# ----------------------------------------------------------------------------
def _conv_bn_relu_kernel(x_ref, w_ref, shift_ref, o_ref, *, k, row_stride,
                         rows_per_tile):
    # x_ref:  (n_rows + (k-1)*row_stride, Cin_p)  full padded input (resident)
    # w_ref:  (k * Cin_p, F_p) bf16, BN scale folded in
    # shift:  (1, F_p) f32, folded conv-bias / BN shift
    # o_ref:  (rows_per_tile, F_p) output tile
    row0 = pl.multiple_of(pl.program_id(0) * rows_per_tile, SUBLANE)
    win = rows_per_tile + (k - 1) * row_stride
    # Cast the (small) haloed window once; build im2col in bf16.
    x16 = x_ref[pl.ds(row0, win), :].astype(jnp.bfloat16)
    if k == 1:
        cols = x16
    else:
        cols = jnp.concatenate(
            [x16[j * row_stride:j * row_stride + rows_per_tile, :]
             for j in range(k)], axis=-1)
    acc = jnp.dot(cols, w_ref[...], preferred_element_type=jnp.float32)
    o_ref[...] = jnp.maximum(acc + shift_ref[...], 0.0)


def conv_bn_relu(x_flat, w_kf, shift, *, k_taps, batch):
    assert k_taps == 1 or k_taps % 2 == 1, "even kernel_size unsupported"
    n_rows, _ = x_flat.shape
    f_pad = w_kf.shape[1]
    pad = (k_taps // 2) * batch
    xp = jnp.pad(x_flat, ((pad, pad), (0, 0))) if pad else x_flat
    rows_per_tile = _pick_row_tile(n_rows, batch)
    kernel = functools.partial(_conv_bn_relu_kernel, k=k_taps, row_stride=batch,
                               rows_per_tile=rows_per_tile)
    return pl.pallas_call(
        kernel,
        out_shape=jax.ShapeDtypeStruct((n_rows, f_pad), jnp.float32),
        grid=(n_rows // rows_per_tile,),
        in_specs=[
            pl.BlockSpec(xp.shape, lambda i: (0, 0)),        # input resident
            pl.BlockSpec(w_kf.shape, lambda i: (0, 0)),      # weights resident
            pl.BlockSpec(shift.shape, lambda i: (0, 0)),
        ],
        out_specs=pl.BlockSpec((rows_per_tile, f_pad), lambda i: (i, 0)),
        compiler_params=pltpu.CompilerParams(
            dimension_semantics=("parallel",),
            vmem_limit_bytes=VMEM_LIMIT),
    )(xp, w_kf, shift)


# ----------------------------------------------------------------------------
# Unidirectional LSTM on (T, batch_tile, lanes) layout, optional fused 1x1-conv
# head. Weights pre-reordered to gate order (i, f, o, g) and lane-padded.
# ----------------------------------------------------------------------------
def _lstm_kernel(*refs, fuse_head):
    if fuse_head:
        (x_ref, wih_ref, whh_ref, b_ref, wo_ref, bo_ref,
         hs_ref, lg_ref, xp_ref, h_ref, c_ref) = refs
    else:
        (x_ref, wih_ref, whh_ref, b_ref, hs_ref, xp_ref, h_ref, c_ref) = refs
        wo_ref = bo_ref = lg_ref = None

    n_t, bt, cin_p = x_ref.shape
    h_p = h_ref.shape[1]
    h4_p = 4 * h_p

    # Whole-sequence input projection, chunked over time (bounds the f32 temp),
    # result stored in a bf16 scratch (halves the largest LSTM buffer).
    tc = min(n_t, max(1, 512 // bt))
    while n_t % tc:
        tc -= 1
    n_chunks = n_t // tc

    def proj(ci, carry):
        t0 = ci * tc
        xc = x_ref[pl.ds(t0, tc)].reshape(tc * bt, cin_p).astype(jnp.bfloat16)
        p = jnp.dot(xc, wih_ref[...], preferred_element_type=jnp.float32)
        p = p + b_ref[...]
        xp_ref[pl.ds(t0, tc)] = p.reshape(tc, bt, h4_p).astype(jnp.bfloat16)
        return carry

    lax.fori_loop(0, n_chunks, proj, 0)

    h_ref[...] = jnp.zeros_like(h_ref)
    c_ref[...] = jnp.zeros_like(c_ref)

    def step(t, carry):
        gates = xp_ref[t].astype(jnp.float32) + jnp.dot(
            h_ref[...].astype(jnp.bfloat16), whh_ref[...],
            preferred_element_type=jnp.float32)
        # gate order (i, f, o, g): one contiguous sigmoid slab + one tanh slab.
        sig = jax.nn.sigmoid(gates[:, :3 * h_p])
        i_g = sig[:, 0 * h_p:1 * h_p]
        f_g = sig[:, 1 * h_p:2 * h_p]
        o_g = sig[:, 2 * h_p:3 * h_p]
        g_c = jnp.tanh(gates[:, 3 * h_p:])
        c_new = f_g * c_ref[...] + i_g * g_c
        h_new = o_g * jnp.tanh(c_new)
        c_ref[...] = c_new
        h_ref[...] = h_new
        hs_ref[t] = h_new
        if fuse_head:
            lg_ref[t] = jnp.dot(h_new.astype(jnp.bfloat16), wo_ref[...],
                                preferred_element_type=jnp.float32) + bo_ref[...]
        return carry

    lax.fori_loop(0, n_t, step, 0, unroll=4)


def lstm_forward(x_3d, wih_t, whh_t, b, head_w=None, head_b=None):
    n_t, b_pad, cin_p = x_3d.shape
    h4_p = wih_t.shape[1]
    h_p = h4_p // 4
    fuse = head_w is not None

    # Batch rows are independent: shard across TensorCores on v7x when possible.
    n_bt = 2 if (b_pad >= 2 * SUBLANE and (b_pad // 2) % SUBLANE == 0) else 1
    bt = b_pad // n_bt

    in_arrays = [x_3d, wih_t, whh_t, b]
    in_specs = [
        pl.BlockSpec((n_t, bt, cin_p), lambda i: (0, i, 0)),
        pl.BlockSpec(wih_t.shape, lambda i: (0, 0)),
        pl.BlockSpec(whh_t.shape, lambda i: (0, 0)),
        pl.BlockSpec(b.shape, lambda i: (0, 0)),
    ]
    out_shapes = [jax.ShapeDtypeStruct((n_t, b_pad, h_p), jnp.float32)]
    out_specs = [pl.BlockSpec((n_t, bt, h_p), lambda i: (0, i, 0))]
    if fuse:
        c_p = head_w.shape[1]
        in_arrays += [head_w, head_b]
        in_specs += [pl.BlockSpec(head_w.shape, lambda i: (0, 0)),
                     pl.BlockSpec(head_b.shape, lambda i: (0, 0))]
        out_shapes.append(jax.ShapeDtypeStruct((n_t, b_pad, c_p), jnp.float32))
        out_specs.append(pl.BlockSpec((n_t, bt, c_p), lambda i: (0, i, 0)))

    kernel = functools.partial(_lstm_kernel, fuse_head=fuse)
    return pl.pallas_call(
        kernel,
        out_shape=tuple(out_shapes) if fuse else out_shapes[0],
        grid=(n_bt,),
        in_specs=in_specs,
        out_specs=tuple(out_specs) if fuse else out_specs[0],
        scratch_shapes=[
            pltpu.VMEM((n_t, bt, h4_p), jnp.bfloat16),   # precomputed x proj (bf16)
            pltpu.VMEM((bt, h_p), jnp.float32),          # h
            pltpu.VMEM((bt, h_p), jnp.float32),          # c
        ],
        compiler_params=pltpu.CompilerParams(
            dimension_semantics=("parallel",),
            vmem_limit_bytes=VMEM_LIMIT),
    )(*in_arrays)


# ----------------------------------------------------------------------------
# Parameters: torch-layout init + prep (BN fold, gate reorder, lane padding, bf16)
# ----------------------------------------------------------------------------
def init_params_torch(key, *, in_ch, num_conv_layers, num_conv_filters, kernel_size,
                      num_lstm_layers, num_lstm_hidden_units, num_classes):
    """Deterministic params in the exact layouts nn.Module.__init__ creates."""
    raw = {"conv": [], "lstm": []}
    F, k, H = num_conv_filters, kernel_size, num_lstm_hidden_units
    for i in range(num_conv_layers):
        cin = in_ch if i == 0 else F
        key, k1, k2, k3, k4, k5, k6 = jax.random.split(key, 7)
        raw["conv"].append(dict(
            w=0.1 * jax.random.normal(k1, (F, cin, k, 1), jnp.float32),
            bias=0.1 * jax.random.normal(k2, (F,), jnp.float32),
            gamma=1.0 + 0.1 * jax.random.normal(k3, (F,), jnp.float32),
            beta=0.1 * jax.random.normal(k4, (F,), jnp.float32),
            mean=0.1 * jax.random.normal(k5, (F,), jnp.float32),
            var=0.5 + jax.random.uniform(k6, (F,), jnp.float32),
        ))
    for i in range(num_lstm_layers):
        fin = F if i == 0 else H
        key, k1, k2, k3, k4 = jax.random.split(key, 5)
        s = 1.0 / (H ** 0.5)
        raw["lstm"].append(dict(
            w_ih=jax.random.uniform(k1, (4 * H, fin), jnp.float32, -s, s),
            w_hh=jax.random.uniform(k2, (4 * H, H), jnp.float32, -s, s),
            b_ih=jax.random.uniform(k3, (4 * H,), jnp.float32, -s, s),
            b_hh=jax.random.uniform(k4, (4 * H,), jnp.float32, -s, s),
        ))
    key, k1, k2 = jax.random.split(key, 3)
    raw["out_w"] = 0.1 * jax.random.normal(k1, (num_classes, H, 1, 1), jnp.float32)
    raw["out_b"] = 0.1 * jax.random.normal(k2, (num_classes,), jnp.float32)
    return raw


def _prep_conv(w, bias, gamma, beta, mean, var, *, f_pad, dense_taps):
    F, cin, k, _ = w.shape
    scale = gamma * lax.rsqrt(var + BN_EPS)                 # (F,)
    shift = beta + (bias - mean) * scale                    # (F,)
    w_kcf = jnp.transpose(w[:, :, :, 0] * scale[:, None, None], (2, 1, 0))  # (k,Cin,F)
    shift_pad = jnp.zeros((1, f_pad), jnp.float32).at[0, :F].set(shift)
    if dense_taps:
        # Pack k*Cin densely into K (wrapper builds the matching dense im2col).
        k_rows = _round_up(k * cin, LANE)
        w_flat = jnp.zeros((k_rows, f_pad), jnp.float32)
        w_flat = w_flat.at[:k * cin, :F].set(w_kcf.reshape(k * cin, F))
        return {"w": w_flat.astype(jnp.bfloat16), "shift": shift_pad, "k_taps": 1}
    cin_pad = _round_up(cin, LANE)
    w_pad = jnp.zeros((k, cin_pad, f_pad), jnp.float32).at[:, :cin, :F].set(w_kcf)
    return {"w": w_pad.reshape(k * cin_pad, f_pad).astype(jnp.bfloat16),
            "shift": shift_pad, "k_taps": int(k)}


_GATE_ORDER = (0, 1, 3, 2)   # torch gate order (i, f, g, o) -> kernel (i, f, o, g)


def _prep_lstm(w_ih, w_hh, b_ih, b_hh, *, h, h_pad, fin_pad):
    fin = w_ih.shape[1]
    b = b_ih + b_hh
    wih_t = jnp.zeros((fin_pad, 4 * h_pad), jnp.float32)
    whh_t = jnp.zeros((h_pad, 4 * h_pad), jnp.float32)
    bias = jnp.zeros((1, 4 * h_pad), jnp.float32)
    for gi, src in enumerate(_GATE_ORDER):
        rows = slice(src * h, (src + 1) * h)
        cols = slice(gi * h_pad, gi * h_pad + h)
        wih_t = wih_t.at[:fin, cols].set(w_ih[rows, :].T)
        whh_t = whh_t.at[:h, cols].set(w_hh[rows, :].T)
        bias = bias.at[0, cols].set(b[rows])
    return {"wih_t": wih_t.astype(jnp.bfloat16),
            "whh_t": whh_t.astype(jnp.bfloat16),
            "b": bias}


def _prep_head(w, b, *, h, h_pad, c, c_pad):
    w_hc = jnp.zeros((h_pad, c_pad), jnp.float32).at[:h, :c].set(w[:, :, 0, 0].T)
    b_c = jnp.zeros((1, c_pad), jnp.float32).at[0, :c].set(b)
    return w_hc.astype(jnp.bfloat16), b_c


def prepare_params(raw, *, in_ch, num_conv_filters, num_lstm_hidden_units,
                   num_classes):
    F, H, C = num_conv_filters, num_lstm_hidden_units, num_classes
    k = int(raw["conv"][0]["w"].shape[2])
    assert k % 2 == 1, "even kernel_size is unsupported (padding assumes odd k)"
    f_pad = _round_up(F, LANE)
    h_pad = _round_up(H, LANE)
    c_pad = _round_up(C, LANE)
    params = {"conv_blocks": [], "lstm_blocks": [], "hidden": H, "n_classes": C,
              "k": k}
    for i, blk in enumerate(raw["conv"]):
        params["conv_blocks"].append(
            _prep_conv(**blk, f_pad=f_pad, dense_taps=(i == 0)))
    for i, blk in enumerate(raw["lstm"]):
        params["lstm_blocks"].append(
            _prep_lstm(**blk, h=H, h_pad=h_pad,
                       fin_pad=(f_pad if i == 0 else h_pad)))
    params["out_w"], params["out_b"] = _prep_head(
        raw["out_w"], raw["out_b"], h=H, h_pad=h_pad, c=C, c_pad=c_pad)
    return params


# ----------------------------------------------------------------------------
# Full forward pass (mirrors DeepConvLSTM3.forward with mixup=False)
# ----------------------------------------------------------------------------
def deep_conv_lstm3_forward(params, x, y=None):
    # x: (B, in_ch, T, 1)  (torch NCHW)
    B, ch, T, _ = x.shape
    b_pad = _round_up(B, SUBLANE)
    k = params["k"]

    # NCHW -> time-major (T, B_pad, ch); batch zero-padded to a sublane multiple.
    h3 = jnp.transpose(x[:, :, :, 0], (2, 0, 1))                    # (T, B, ch)
    h3 = jnp.pad(h3, ((0, 0), (0, b_pad - B), (0, 0)))

    # Conv layer 0: dense im2col over the tiny raw in_ch (K = round_up(k*ch, 128)),
    # then a single-GEMM call of the fused conv kernel (k_taps=1).
    blk0 = params["conv_blocks"][0]
    pad_t = k // 2
    hp3 = jnp.pad(h3, ((pad_t, pad_t), (0, 0), (0, 0)))
    cols0 = jnp.concatenate([hp3[j:j + T] for j in range(k)], axis=-1)  # (T,Bp,k*ch)
    k0_pad = blk0["w"].shape[0]
    cols0 = jnp.pad(cols0, ((0, 0), (0, 0), (0, k0_pad - cols0.shape[-1])))
    h = conv_bn_relu(cols0.reshape(T * b_pad, k0_pad), blk0["w"], blk0["shift"],
                     k_taps=1, batch=b_pad)

    for blk in params["conv_blocks"][1:]:
        h = conv_bn_relu(h, blk["w"], blk["shift"], k_taps=blk["k_taps"],
                         batch=b_pad)
    # == x.squeeze(3).transpose(1, 2) in the torch code (already time-major here)

    h3 = h.reshape(T, b_pad, h.shape[-1])
    n_lstm = len(params["lstm_blocks"])
    logits3 = None
    for li, blk in enumerate(params["lstm_blocks"]):
        if li == n_lstm - 1:
            # Last LSTM layer: 1x1-conv output head fused into the time loop.
            h3, logits3 = lstm_forward(h3, blk["wih_t"], blk["whh_t"], blk["b"],
                                       head_w=params["out_w"],
                                       head_b=params["out_b"])
        else:
            h3 = lstm_forward(h3, blk["wih_t"], blk["whh_t"], blk["b"])
        # Dropout(p=0.5) -> identity at inference.

    H, C = params["hidden"], params["n_classes"]
    feats = jnp.transpose(h3[:, :B, :H], (1, 2, 0))[..., None]      # (B, H, T, 1)
    out = jnp.transpose(logits3[:, :B, :C], (1, 2, 0))[..., None]   # (B, C, T, 1)
    return out, None, feats


if __name__ == "__main__":
    # Small config consistent with the module's cfg fields.
    B, in_ch, T = 2, 4, 16
    num_conv_layers, num_conv_filters, kernel_size = 2, 32, 5
    num_lstm_layers, num_lstm_hidden_units = 1, 32
    num_classes = 6

    key = jax.random.PRNGKey(0)
    key, kx, ky, kp = jax.random.split(key, 4)
    x = jax.random.normal(kx, (B, in_ch, T, 1), jnp.float32)
    y = jax.random.randint(ky, (B,), 0, num_classes)

    raw = init_params_torch(
        kp, in_ch=in_ch, num_conv_layers=num_conv_layers,
        num_conv_filters=num_conv_filters, kernel_size=kernel_size,
        num_lstm_layers=num_lstm_layers,
        num_lstm_hidden_units=num_lstm_hidden_units, num_classes=num_classes)
    params = prepare_params(
        raw, in_ch=in_ch, num_conv_filters=num_conv_filters,
        num_lstm_hidden_units=num_lstm_hidden_units, num_classes=num_classes)

    out, _none, feats = deep_conv_lstm3_forward(params, x, y)
    jax.block_until_ready((out, feats))

    assert out.shape == (B, num_classes, T, 1), out.shape
    assert feats.shape == (B, num_lstm_hidden_units, T, 1), feats.shape
    assert jnp.all(jnp.isfinite(out)) and jnp.all(jnp.isfinite(feats))
    print("KERNEL_OK")
</pallas_src>

<mosaic_0001>
module attributes {stable_mosaic.version = 11 : i64} {
  func.func @_conv_bn_relu_kernel(%arg0: i32, %arg1: memref<128x128xf32, #tpu.memory_space<vmem>>, %arg2: memref<128x128xbf16, #tpu.memory_space<vmem>>, %arg3: memref<1x128xf32, #tpu.memory_space<vmem>>, %arg4: memref<128x128xf32, #tpu.memory_space<vmem>>) attributes {dimension_semantics = [#tpu.dimension_semantics<parallel>], iteration_bounds = array<i64: 1>, scalar_prefetch = 0 : i64, scratch_operands = 0 : i64, tpu.core_type = #tpu.core_type<tc>, window_params = [{pipeline_mode = #tpu.pipeline_mode<synchronous>, transform_indices = @transform_0, window_bounds = array<i64: 128, 128>}, {pipeline_mode = #tpu.pipeline_mode<synchronous>, transform_indices = @transform_1, window_bounds = array<i64: 128, 128>}, {pipeline_mode = #tpu.pipeline_mode<synchronous>, transform_indices = @transform_2, window_bounds = array<i64: 1, 128>}, {transform_indices = @transform_3, window_bounds = array<i64: 128, 128>}]} {
    %c128_i32 = arith.constant 128 : i32
    %0 = arith.muli %arg0, %c128_i32 : i32
    %1 = tpu.assume_multiple %0, 8 : i32
    %2 = arith.index_cast %1 : i32 to index
    %c0 = arith.constant 0 : index
    %3 = vector.load %arg1[%2, %c0] : memref<128x128xf32, #tpu.memory_space<vmem>>, vector<128x128xf32>
    %4 = arith.truncf %3 : vector<128x128xf32> to vector<128x128xbf16>
    %c0_0 = arith.constant 0 : index
    %c0_1 = arith.constant 0 : index
    %5 = vector.load %arg2[%c0_0, %c0_1] : memref<128x128xbf16, #tpu.memory_space<vmem>>, vector<128x128xbf16>
    %cst = arith.constant dense<0.000000e+00> : vector<128x128xf32>
    %6 = tpu.matmul %4, %5, %cst {dimension_numbers = #tpu.dot_dimension_numbers<[1], [0], [0], [1], [0, 0, 1, 1], [], []>} : vector<128x128xbf16>, vector<128x128xbf16>, vector<128x128xf32> -> vector<128x128xf32>
    %c0_2 = arith.constant 0 : index
    %c0_3 = arith.constant 0 : index
    %7 = vector.load %arg3[%c0_2, %c0_3] : memref<1x128xf32, #tpu.memory_space<vmem>>, vector<1x128xf32>
    %8 = vector.broadcast %7 : vector<1x128xf32> to vector<128x128xf32>
    %9 = arith.addf %6, %8 : vector<128x128xf32>
    %cst_4 = arith.constant 0.000000e+00 : f32
    %10 = vector.broadcast %cst_4 : f32 to vector<128x128xf32>
    %11 = arith.maximumf %9, %10 : vector<128x128xf32>
    %c0_5 = arith.constant 0 : index
    %c0_6 = arith.constant 0 : index
    %12 = vector.load %arg4[%c0_5, %c0_6] : memref<128x128xf32, #tpu.memory_space<vmem>>, vector<128x128xf32>
    tpu.vector_store %arg4[%c0_5, %c0_6], %11 {strides = array<i32>} : memref<128x128xf32, #tpu.memory_space<vmem>>, vector<128x128xf32>,
    return
  }
  func.func @transform_0(%arg0: i32) -> (i32, i32) {
    %c0_i32 = arith.constant 0 : i32
    %c0_i32_0 = arith.constant 0 : i32
    %c0_i32_1 = arith.constant 0 : i32
    return %c0_i32, %c0_i32_0 : i32, i32
  }
  func.func @transform_1(%arg0: i32) -> (i32, i32) {
    %c0_i32 = arith.constant 0 : i32
    %c0_i32_0 = arith.constant 0 : i32
    %c0_i32_1 = arith.constant 0 : i32
    return %c0_i32, %c0_i32_0 : i32, i32
  }
  func.func @transform_2(%arg0: i32) -> (i32, i32) {
    %c0_i32 = arith.constant 0 : i32
    %c0_i32_0 = arith.constant 0 : i32
    %c0_i32_1 = arith.constant 0 : i32
    return %c0_i32, %c0_i32_0 : i32, i32
  }
  func.func @transform_3(%arg0: i32) -> (i32, i32) {
    %c0_i32 = arith.constant 0 : i32
    %c0_i32_0 = arith.constant 0 : i32
    return %arg0, %c0_i32 : i32, i32
  }
}

</mosaic_0001>

<llo_original>
// kernel: tpu_custom_call.1
$region0: #{tpu_custom_call.1}
  #allocation0 [shape = 'u32[]', space=smem, size = 0x4, offset = 0x4, fixed_abs, tag = 'smem constant byte address 0x4 - core index']
  #allocation1 [shape = 'u32[144,128]{1,0:T(1,128)}', space=vmem, size = 0x12000, scoped, tag = 'internal scratch']
  %s0 = inlined_call_operand.hbm [shape: f32[128,128], index: 0, kind: input, shape index: {}]
  %s1 = inlined_call_operand.hbm [shape: bf16[128,128], index: 1, kind: input, shape index: {}]
  %s2 = inlined_call_operand.vmem [shape: f32[1,128], index: 2, kind: input, shape index: {}]
  %s3 = inlined_call_operand.hbm [shape: f32[128,128], index: 3, kind: output, shape index: {}]
  %s4 = sld [smem:[#allocation0]]
  $region30: #{tpu_custom_call.1} parent=0
    _
  %s6 = ssub.s32 1, %s4
  %s7 = scalar_select 0, %s6, %s4
  $region1: #{tpu_custom_call.1} parent=0
    #allocation2 [shape = 'u8[65536]{0}', space=vmem, size = 0x10000, scoped, tag = 'input window, operand 0, single buffered']
    #allocation3 [shape = 's32[1]{0}', space=sflag, size = 0x4, scoped, tag = 'scoped memory for tpu_custom_call.1']
    #allocation4 [shape = 's32[1]{0}', space=sflag, size = 0x4, scoped, tag = 'scoped memory for tpu_custom_call.1']
    #allocation5 [shape = 'u8[32768]{0}', space=vmem, size = 0x8000, scoped, tag = 'input window, operand 1, single buffered']
    #allocation6 [shape = 's32[1]{0}', space=sflag, size = 0x4, scoped, tag = 'scoped memory for tpu_custom_call.1']
    #allocation7 [shape = 'u8[65536]{0}', space=vmem, size = 0x10000, scoped, tag = 'output window, operand 0, single buffered']
    %8 = vsyncpa [#allocation3], 0
    %9 = vsyncpa [#allocation6], 0
    %10 = vsyncpa [#allocation4], 0
    // Predicated region
    $region2: #{tpu_custom_call.1} parent=1 // pred_check
      _
    $region3: #{tpu_custom_call.1} parent=1 // pred_check_branch
      %12 = sbr.rel (0) target = $region5
    $region4: #{tpu_custom_call.1} parent=1 // pred_region
      %s14 = ssub.s32 2048, 2048
      %15 = vsyncadd [#allocation3], %s14
      %s16 = sshll.u32 [#allocation2], 4
      %s17 = int_to_ptr.vmem [resolvable:$true] %s16
      %22 = dma.hbm_to_vmem [thread:$0]  %s0, 2048, %s17, [#allocation3], 128, 128, 8
    $region5: #{tpu_custom_call.1} parent=1 // pred_fallthru
      _
    // Predicated region
    $region6: #{tpu_custom_call.1} parent=1 // pred_check
      _
    $region7: #{tpu_custom_call.1} parent=1 // pred_check_branch
      %24 = sbr.rel (0) target = $region9
    $region8: #{tpu_custom_call.1} parent=1 // pred_region
      %s26 = ssub.s32 1024, 1024
      %27 = vsyncadd [#allocation6], %s26
      %s28 = sshll.u32 [#allocation5], 4
      %s29 = int_to_ptr.vmem [resolvable:$true] %s28
      %34 = dma.hbm_to_vmem [thread:$0]  %s1, 1024, %s29, [#allocation6], 64, 64, 4
    $region9: #{tpu_custom_call.1} parent=1 // pred_fallthru
      _
    // Predicated region
    $region10: #{tpu_custom_call.1} parent=1 // pred_check
      _
    $region11: #{tpu_custom_call.1} parent=1 // pred_check_branch
      %36 = sbr.rel (0) target = $region13
    $region12: #{tpu_custom_call.1} parent=1 // pred_region
      _
    $region13: #{tpu_custom_call.1} parent=1 // pred_fallthru
      _
    // Predicated region
    $region14: #{tpu_custom_call.1} parent=1 // pred_check
      _
    $region15: #{tpu_custom_call.1} parent=1 // pred_check_branch
      %38 = sbr.rel (0) target = $region17
    $region16: #{tpu_custom_call.1} parent=1 // pred_region
      %39 = dma.done [#allocation3], 2048
    $region17: #{tpu_custom_call.1} parent=1 // pred_fallthru
      _
    // Predicated region
    $region18: #{tpu_custom_call.1} parent=1 // pred_check
      _
    $region19: #{tpu_custom_call.1} parent=1 // pred_check_branch
      %41 = sbr.rel (0) target = $region21
    $region20: #{tpu_custom_call.1} parent=1 // pred_region
      %42 = dma.done [#allocation6], 1024
    $region21: #{tpu_custom_call.1} parent=1 // pred_fallthru
      _
    %s44 = smul.u32 0, 128
    %s45 = scalar_lea.vmem [#allocation2], %s44
    %v46 = vld [vmem:[%s45] sm:$0xff]
    %v47 = vld [vmem:[%s45 + $0x8] sm:$0xff]
    %v48 = vld [vmem:[%s45 + $0x10] sm:$0xff]
    %v49 = vld [vmem:[%s45 + $0x18] sm:$0xff]
    %v50 = vld [vmem:[%s45 + $0x20] sm:$0xff]
    %v51 = vld [vmem:[%s45 + $0x28] sm:$0xff]
    %v52 = vld [vmem:[%s45 + $0x30] sm:$0xff]
    %v53 = vld [vmem:[%s45 + $0x38] sm:$0xff]
    %v54 = vld [vmem:[%s45 + $0x40] sm:$0xff]
    %v55 = vld [vmem:[%s45 + $0x48] sm:$0xff]
    %v56 = vld [vmem:[%s45 + $0x50] sm:$0xff]
    %v57 = vld [vmem:[%s45 + $0x58] sm:$0xff]
    %v58 = vld [vmem:[%s45 + $0x60] sm:$0xff]
    %v59 = vld [vmem:[%s45 + $0x68] sm:$0xff]
    %v60 = vld [vmem:[%s45 + $0x70] sm:$0xff]
    %v61 = vld [vmem:[%s45 + $0x78] sm:$0xff]
    %v62 = vpack.c.bf16 %v47, %v46
    %v63 = vpack.c.bf16 %v49, %v48
    %v64 = vpack.c.bf16 %v51, %v50
    %v65 = vpack.c.bf16 %v53, %v52
    %v66 = vpack.c.bf16 %v55, %v54
    %v67 = vpack.c.bf16 %v57, %v56
    %v68 = vpack.c.bf16 %v59, %v58
    %v69 = vpack.c.bf16 %v61, %v60
    %v70 = vld [vmem:[#allocation5] sm:$0xf]
    %v71 = vld [vmem:[#allocation5 + $0x4] sm:$0xf]
    %v72 = vld [vmem:[#allocation5 + $0x8] sm:$0xf]
    %v73 = vld [vmem:[#allocation5 + $0xc] sm:$0xf]
    %v74 = vld [vmem:[#allocation5 + $0x10] sm:$0xf]
    %v75 = vld [vmem:[#allocation5 + $0x14] sm:$0xf]
    %v76 = vld [vmem:[#allocation5 + $0x18] sm:$0xf]
    %v77 = vld [vmem:[#allocation5 + $0x1c] sm:$0xf]
    %v78 = vld [vmem:[#allocation5 + $0x20] sm:$0xf]
    %v79 = vld [vmem:[#allocation5 + $0x24] sm:$0xf]
    %v80 = vld [vmem:[#allocation5 + $0x28] sm:$0xf]
    %v81 = vld [vmem:[#allocation5 + $0x2c] sm:$0xf]
    %v82 = vld [vmem:[#allocation5 + $0x30] sm:$0xf]
    %v83 = vld [vmem:[#allocation5 + $0x34] sm:$0xf]
    %v84 = vld [vmem:[#allocation5 + $0x38] sm:$0xf]
    %v85 = vld [vmem:[#allocation5 + $0x3c] sm:$0xf]
    %v86 = vld [vmem:[%s2] sm:$0x1]
    %v88 = vlaneseq
    %v89 = vshrl.u32 %v88, 7
    %v90 = vsub.s32 0, %v89
    %v91 = vrot.slane %v86, %v90
    %v109 = vunpack.c.l.b16 %v70
    %v110 = vunpack.c.l.b16 %v71
    %v111 = vunpack.c.l.b16 %v72
    %v112 = vunpack.c.l.b16 %v73
    %v113 = vunpack.c.l.b16 %v74
    %v114 = vunpack.c.l.b16 %v75
    %v115 = vunpack.c.l.b16 %v76
    %v116 = vunpack.c.l.b16 %v77
    %v117 = vunpack.c.l.b16 %v78
    %v118 = vunpack.c.l.b16 %v79
    %v119 = vunpack.c.l.b16 %v80
    %v120 = vunpack.c.l.b16 %v81
    %v121 = vunpack.c.l.b16 %v82
    %v122 = vunpack.c.l.b16 %v83
    %v123 = vunpack.c.l.b16 %v84
    %v124 = vunpack.c.l.b16 %v85
    %v125 = vpack.c.b16 %v110, %v109
    %v126 = vpack.c.b16 %v112, %v111
    %v127 = vpack.c.b16 %v114, %v113
    %v128 = vpack.c.b16 %v116, %v115
    %v129 = vpack.c.b16 %v118, %v117
    %v130 = vpack.c.b16 %v120, %v119
    %v131 = vpack.c.b16 %v122, %v121
    %v132 = vpack.c.b16 %v124, %v123
    %141 = vmatprep.subr.bf16.mxu0 0
    %142 = vmatpush1.bf16.msra.mxu0 %v132
    %143 = vmatprep.subr.bf16.mxu0 0
    %144 = vmatpush1.bf16.msra.mxu0 %v131
    %145 = vmatprep.subr.bf16.mxu0 0
    %146 = vmatpush1.bf16.msra.mxu0 %v130
    %147 = vmatprep.subr.bf16.mxu0 0
    %148 = vmatpush1.bf16.msra.mxu0 %v129
    %149 = vmatprep.subr.bf16.mxu0 0
    %150 = vmatpush1.bf16.msra.mxu0 %v128
    %151 = vmatprep.subr.bf16.mxu0 0
    %152 = vmatpush1.bf16.msra.mxu0 %v127
    %153 = vmatprep.subr.bf16.mxu0 0
    %154 = vmatpush1.bf16.msra.mxu0 %v126
    %155 = vmatprep.subr.bf16.mxu0 0
    %156 = vmatpush1.bf16.msra.mxu0 %v125
    %157 = vmatprep.subr.bf16.mxu0 0
    %158 = vmatpush2.bf16.msra.mxu0 0
    %159 = vmatprep.subr.bf16.mxu0 0
    %160 = vmatpush2.bf16.msra.mxu0 0
    %161 = vmatprep.subr.bf16.mxu0 0
    %162 = vmatpush2.bf16.msra.mxu0 0
    %163 = vmatprep.subr.bf16.mxu0 0
    %164 = vmatpush2.bf16.msra.mxu0 0
    %165 = vmatprep.subr.bf16.mxu0 0
    %166 = vmatpush2.bf16.msra.mxu0 0
    %167 = vmatprep.subr.bf16.mxu0 0
    %168 = vmatpush2.bf16.msra.mxu0 0
    %169 = vmatprep.subr.bf16.mxu0 0
    %170 = vmatpush2.bf16.msra.mxu0 0
    %171 = vmatprep.subr.bf16.mxu0 0
    %172 = vmatpush2.bf16.msra.mxu0 0
    %173 = vmatprep.mubr.bf16.mxu0 0
    %174 = vmatmul.mubr.bf16.gmra.mxu0 %v62
    %v175 = vpop.f32.mrf.mxu0
    %v176 = vadd.f32 %v91, %v175
    %v177 = vpop.f32.mrf.mxu0
    %v178 = vpop.f32.mrf.mxu0
    %v179 = vadd.f32 %v91, %v178
    %v180 = vpop.f32.mrf.mxu0
    %181 = vmatprep.mubr.bf16.mxu0 0
    %182 = vmatmul.mubr.bf16.gmra.mxu0 %v63
    %v183 = vpop.f32.mrf.mxu0
    %v184 = vadd.f32 %v91, %v183
    %v185 = vpop.f32.mrf.mxu0
    %v186 = vpop.f32.mrf.mxu0
    %v187 = vadd.f32 %v91, %v186
    %v188 = vpop.f32.mrf.mxu0
    %189 = vmatprep.mubr.bf16.mxu0 0
    %190 = vmatmul.mubr.bf16.gmra.mxu0 %v64
    %v191 = vpop.f32.mrf.mxu0
    %v192 = vadd.f32 %v91, %v191
    %v193 = vpop.f32.mrf.mxu0
    %v194 = vpop.f32.mrf.mxu0
    %v195 = vadd.f32 %v91, %v194
    %v196 = vpop.f32.mrf.mxu0
    %197 = vmatprep.mubr.bf16.mxu0 0
    %198 = vmatmul.mubr.bf16.gmra.mxu0 %v65
    %v199 = vpop.f32.mrf.mxu0
    %v200 = vadd.f32 %v91, %v199
    %v201 = vpop.f32.mrf.mxu0
    %v202 = vpop.f32.mrf.mxu0
    %v203 = vadd.f32 %v91, %v202
    %v204 = vpop.f32.mrf.mxu0
    %205 = vmatprep.mubr.bf16.mxu0 0
    %206 = vmatmul.mubr.bf16.gmra.mxu0 %v66
    %v207 = vpop.f32.mrf.mxu0
    %v208 = vadd.f32 %v91, %v207
    %v209 = vpop.f32.mrf.mxu0
    %v210 = vpop.f32.mrf.mxu0
    %v211 = vadd.f32 %v91, %v210
    %v212 = vpop.f32.mrf.mxu0
    %213 = vmatprep.mubr.bf16.mxu0 0
    %214 = vmatmul.mubr.bf16.gmra.mxu0 %v67
    %v215 = vpop.f32.mrf.mxu0
    %v216 = vadd.f32 %v91, %v215
    %v217 = vpop.f32.mrf.mxu0
    %v218 = vpop.f32.mrf.mxu0
    %v219 = vadd.f32 %v91, %v218
    %v220 = vpop.f32.mrf.mxu0
    %221 = vmatprep.mubr.bf16.mxu0 0
    %222 = vmatmul.mubr.bf16.gmra.mxu0 %v68
    %v223 = vpop.f32.mrf.mxu0
    %v224 = vadd.f32 %v91, %v223
    %v225 = vpop.f32.mrf.mxu0
    %v226 = vpop.f32.mrf.mxu0
    %v227 = vadd.f32 %v91, %v226
    %v228 = vpop.f32.mrf.mxu0
    %229 = vmatprep.mubr.bf16.mxu0 0
    %230 = vmatmul.mubr.bf16.gmra.mxu0 %v69
    %v231 = vpop.f32.mrf.mxu0
    %v232 = vadd.f32 %v91, %v231
    %v233 = vpop.f32.mrf.mxu0
    %v234 = vpop.f32.mrf.mxu0
    %v235 = vadd.f32 %v91, %v234
    %v236 = vpop.f32.mrf.mxu0
    %237 = vdwg.mxu0
    %v238 = vmax.f32 %v176, 0.0
    %v239 = vmax.f32 %v179, 0.0
    %v240 = vmax.f32 %v184, 0.0
    %v241 = vmax.f32 %v187, 0.0
    %v242 = vmax.f32 %v192, 0.0
    %v243 = vmax.f32 %v195, 0.0
    %v244 = vmax.f32 %v200, 0.0
    %v245 = vmax.f32 %v203, 0.0
    %v246 = vmax.f32 %v208, 0.0
    %v247 = vmax.f32 %v211, 0.0
    %v248 = vmax.f32 %v216, 0.0
    %v249 = vmax.f32 %v219, 0.0
    %v250 = vmax.f32 %v224, 0.0
    %v251 = vmax.f32 %v227, 0.0
    %v252 = vmax.f32 %v232, 0.0
    %v253 = vmax.f32 %v235, 0.0
    %254 = vst [vmem:[#allocation7] sm:$0xff] %v238
    %255 = vst [vmem:[#allocation7 + $0x8] sm:$0xff] %v239
    %256 = vst [vmem:[#allocation7 + $0x10] sm:$0xff] %v240
    %257 = vst [vmem:[#allocation7 + $0x18] sm:$0xff] %v241
    %258 = vst [vmem:[#allocation7 + $0x20] sm:$0xff] %v242
    %259 = vst [vmem:[#allocation7 + $0x28] sm:$0xff] %v243
    %260 = vst [vmem:[#allocation7 + $0x30] sm:$0xff] %v244
    %261 = vst [vmem:[#allocation7 + $0x38] sm:$0xff] %v245
    %262 = vst [vmem:[#allocation7 + $0x40] sm:$0xff] %v246
    %263 = vst [vmem:[#allocation7 + $0x48] sm:$0xff] %v247
    %264 = vst [vmem:[#allocation7 + $0x50] sm:$0xff] %v248
    %265 = vst [vmem:[#allocation7 + $0x58] sm:$0xff] %v249
    %266 = vst [vmem:[#allocation7 + $0x60] sm:$0xff] %v250
    %267 = vst [vmem:[#allocation7 + $0x68] sm:$0xff] %v251
    %268 = vst [vmem:[#allocation7 + $0x70] sm:$0xff] %v252
    %269 = vst [vmem:[#allocation7 + $0x78] sm:$0xff] %v253
    // Predicated region
    $region22: #{tpu_custom_call.1} parent=1 // pred_check
      _
    $region23: #{tpu_custom_call.1} parent=1 // pred_check_branch
      %271 = sbr.rel (0) target = $region25
    $region24: #{tpu_custom_call.1} parent=1 // pred_region
      %s273 = ssub.s32 2048, 2048
      %274 = vsyncadd [#allocation4], %s273
      %s275 = sshll.u32 [#allocation7], 4
      %s276 = int_to_ptr.vmem [resolvable:$true] %s275
      %281 = dma.vmem_to_hbm [thread:$0]  %s276, 2048, %s3, [#allocation4], 128, 128, 8
    $region25: #{tpu_custom_call.1} parent=1 // pred_fallthru
      _
    // Predicated region
    $region26: #{tpu_custom_call.1} parent=1 // pred_check
      _
    $region27: #{tpu_custom_call.1} parent=1 // pred_check_branch
      %283 = sbr.rel (0) target = $region29
    $region28: #{tpu_custom_call.1} parent=1 // pred_region
      %284 = dma.done [#allocation4], 2048
    $region29: #{tpu_custom_call.1} parent=1 // pred_fallthru
      _
    %285 = vsyncpa [#allocation3], 1
    %286 = vsyncpa [#allocation6], 1
    %287 = vsyncpa [#allocation4], 1

</llo_original>
